<compile_context>
chip_gen: v7x
topology: tpu7x:2x2x1
jax: 0.10.0
libtpu: 0.0.40
codegen_flags: <defaults>
</compile_context>

<pallas_src>
import functools

import jax
import jax.numpy as jnp
import numpy as np
from jax.experimental import pallas as pl
from jax.experimental.pallas import tpu as pltpu


def _channel_attention_kernel(inv_hw, x_ref, w1_ref, w2_ref, o_ref,
                              sum_ref, max_ref):
    f32 = jnp.float32
    hw_i = pl.program_id(1)

    # x tile: (B, C, hw_tile) -- C on sublanes, HW on lanes (lane-dense).
    x = x_ref[...].astype(f32)
    part_sum = jnp.sum(x, axis=2)                        # (B, C) cross-lane reduce
    part_max = jnp.max(x, axis=2)                        # (B, C)

    @pl.when(hw_i == 0)
    def _():
        sum_ref[...] = part_sum
        max_ref[...] = part_max

    @pl.when(hw_i > 0)
    def _():
        sum_ref[...] = sum_ref[...] + part_sum
        max_ref[...] = jnp.maximum(max_ref[...], part_max)

    @pl.when(hw_i == pl.num_programs(1) - 1)
    def _():
        avg = sum_ref[...] * inv_hw                      # (B, C)  AdaptiveAvgPool2d(1)
        mx = max_ref[...]                                # (B, C)  AdaptiveMaxPool2d(1)

        # Shared MLP fused across the avg/max branches: one fc1 + one fc2 matmul.
        pooled = jnp.concatenate([avg, mx], axis=0)      # (2B, C)
        h = jnp.maximum(
            jnp.dot(pooled, w1_ref[...], preferred_element_type=f32), 0.0)  # (2B, C//16)
        out = jnp.dot(h, w2_ref[...], preferred_element_type=f32)           # (2B, C)

        B = avg.shape[0]
        ca = jax.nn.sigmoid(out[:B] + out[B:])           # (B, C)
        o_ref[...] = ca[:, None, :].astype(o_ref.dtype)  # (B, 1, C)


def _pick_tiling(N, C, HW, x_itemsize, vmem_budget_bytes):
    """Pick (block_b, hw_tile).

    block_b divides N and is capped at N//2 (when N >= 2) so the 'parallel'
    batch axis has at least two steps (v7x second TensorCore).  hw_tile is a
    multiple of 128 dividing HW (lane-dense tiles) or HW itself.
    """
    if HW % 128 == 0:
        hw_cands = [t for t in range(HW, 127, -128) if HW % t == 0]
    else:
        hw_cands = [HW]                       # can't split the lane axis off 128

    bb = N if N == 1 else max(1, N // 2)
    while N % bb:
        bb -= 1

    while True:
        for hw_t in hw_cands:
            if 2 * bb * C * hw_t * x_itemsize <= vmem_budget_bytes:   # 2x double buffer
                return bb, hw_t
        if bb == 1:
            return 1, hw_cands[-1]            # smallest legal tile; vmem_limit is raised
        bb -= 1
        while N % bb:
            bb -= 1


def channel_attention_forward(x_nchw, w_fc1_oihw, w_fc2_oihw, *,
                              block_b=None, hw_tile=None):
    """x_nchw: (N, C, H, W) (PyTorch layout). Returns (N, C, 1, 1)."""
    N, C, H, W = x_nchw.shape
    HW = H * W
    C16 = w_fc1_oihw.shape[0]
    out_dtype = x_nchw.dtype

    # Free reshape of the contiguous NCHW tensor (no HBM transpose pass).
    x = x_nchw.reshape(N, C, HW)
    # PyTorch 1x1-conv weights -> input-major matmul weights (tiny, f32).
    w1 = jnp.transpose(w_fc1_oihw[:, :, 0, 0], (1, 0)).astype(jnp.float32)  # (C, C//16)
    w2 = jnp.transpose(w_fc2_oihw[:, :, 0, 0], (1, 0)).astype(jnp.float32)  # (C//16, C)

    x_itemsize = jnp.dtype(x.dtype).itemsize
    try:
        vmem_cap = int(pltpu.get_tpu_info().vmem_capacity_bytes)
    except Exception:  # pragma: no cover - conservative fallback (v7x per-TC VMEM)
        vmem_cap = 64 << 20

    auto_bb, auto_hw = _pick_tiling(N, C, HW, x_itemsize, vmem_cap // 8)

    if block_b is None:
        block_b = auto_bb
    block_b = max(1, min(int(block_b), N))
    while N % block_b:
        block_b -= 1

    if hw_tile is None:
        hw_tile = auto_hw
    hw_tile = int(hw_tile)
    if HW % hw_tile or (hw_tile % 128 and hw_tile != HW):
        hw_tile = auto_hw

    # Explicit VMEM budget (generation-aware): input double-buffer + weights
    # + resident output + accumulator scratch, with headroom.
    need = (2 * block_b * C * hw_tile * x_itemsize
            + 2 * 2 * C * C16 * 4
            + 2 * block_b * C * jnp.dtype(out_dtype).itemsize
            + 2 * block_b * C * 4)
    vmem_limit = int(min(max(2 * need, 16 << 20), vmem_cap * 7 // 8))

    kernel = functools.partial(_channel_attention_kernel, 1.0 / HW)

    grid_spec = pltpu.PrefetchScalarGridSpec(
        num_scalar_prefetch=0,
        grid=(N // block_b, HW // hw_tile),
        in_specs=[
            pl.BlockSpec((block_b, C, hw_tile), lambda b, h: (b, 0, h)),
            pl.BlockSpec((C, C16), lambda b, h: (0, 0)),
            pl.BlockSpec((C16, C), lambda b, h: (0, 0)),
        ],
        out_specs=pl.BlockSpec((block_b, 1, C), lambda b, h: (b, 0, 0)),
        scratch_shapes=[pltpu.VMEM((block_b, C), jnp.float32),   # running sum
                        pltpu.VMEM((block_b, C), jnp.float32)],  # running max
    )

    cost = pl.CostEstimate(
        flops=int(2 * N * C * HW          # sum + max reductions
                  + 8 * N * C * C16       # fc1 + fc2 over the (2N, C) stack
                  + 2 * N * C),
        transcendentals=int(N * C),       # sigmoid
        bytes_accessed=int(N * C * HW * x_itemsize
                           + 2 * C * C16 * 4
                           + N * C * jnp.dtype(out_dtype).itemsize),
    )

    out = pl.pallas_call(
        kernel,
        out_shape=jax.ShapeDtypeStruct((N, 1, C), out_dtype),
        grid_spec=grid_spec,
        compiler_params=pltpu.CompilerParams(
            dimension_semantics=("parallel", "arbitrary"),
            vmem_limit_bytes=vmem_limit),
        cost_estimate=cost,
    )(x, w1, w2)

    # (N, 1, C) and (N, C, 1, 1) share the same flat layout -> free reshape.
    return out.reshape(N, C, 1, 1)


# ------------------------------ pure-JAX reference --------------------------
def reference_forward(x_nchw, w_fc1_oihw, w_fc2_oihw):
    w1 = w_fc1_oihw[:, :, 0, 0].astype(jnp.float32)          # (C//16, C)
    w2 = w_fc2_oihw[:, :, 0, 0].astype(jnp.float32)          # (C, C//16)
    xf = x_nchw.astype(jnp.float32)
    avg = jnp.mean(xf, axis=(2, 3))                          # (N, C)
    mx = jnp.max(xf, axis=(2, 3))                            # (N, C)

    def mlp(v):
        return jnp.maximum(v @ w1.T, 0.0) @ w2.T

    return jax.nn.sigmoid(mlp(avg) + mlp(mx))[:, :, None, None]


if __name__ == "__main__":
    key = jax.random.PRNGKey(0)
    kx, k1, k2 = jax.random.split(key, 3)

    # in_planes=64 (module hard-codes ratio // 16 -> hidden = 4), batch=4, 16x16.
    N, C, H, W = 4, 64, 16, 16
    C16 = C // 16

    x_nchw = jax.random.normal(kx, (N, C, H, W), jnp.float32)
    w_fc1 = jax.random.normal(k1, (C16, C, 1, 1), jnp.float32) * 0.2   # fc1: C -> C//16
    w_fc2 = jax.random.normal(k2, (C, C16, 1, 1), jnp.float32) * 0.2   # fc2: C//16 -> C

    ref = reference_forward(x_nchw, w_fc1, w_fc2)

    # Forced small tiles: exercises the hw accumulation path (grid = (2, 2)).
    out = channel_attention_forward(x_nchw, w_fc1, w_fc2, block_b=2, hw_tile=128)
    out = jax.block_until_ready(out)
    assert out.shape == (N, C, 1, 1)
    np.testing.assert_allclose(np.asarray(out), np.asarray(ref), rtol=1e-4, atol=1e-4)

    # Auto-tiled path (generation-aware heuristic).
    out_auto = channel_attention_forward(x_nchw, w_fc1, w_fc2)
    out_auto = jax.block_until_ready(out_auto)
    np.testing.assert_allclose(np.asarray(out_auto), np.asarray(ref), rtol=1e-4, atol=1e-4)

    print("KERNEL_OK")
</pallas_src>

<mosaic_0001>
module attributes {stable_mosaic.version = 11 : i64} {
  func.func @_channel_attention_kernel(%arg0: i32, %arg1: i32, %arg2: memref<2x64x128xf32, #tpu.memory_space<vmem>>, %arg3: memref<64x4xf32, #tpu.memory_space<vmem>>, %arg4: memref<4x64xf32, #tpu.memory_space<vmem>>, %arg5: memref<2x1x64xf32, #tpu.memory_space<vmem>>, %arg6: memref<2x64xf32, #tpu.memory_space<vmem>>, %arg7: memref<2x64xf32, #tpu.memory_space<vmem>>) attributes {dimension_semantics = [#tpu.dimension_semantics<parallel>, #tpu.dimension_semantics<arbitrary>], iteration_bounds = array<i64: 2, 2>, scalar_prefetch = 0 : i64, scratch_operands = 2 : i64, tpu.core_type = #tpu.core_type<tc>, window_params = [{transform_indices = @transform_0, window_bounds = array<i64: 2, 64, 128>}, {pipeline_mode = #tpu.pipeline_mode<synchronous>, transform_indices = @transform_1, window_bounds = array<i64: 64, 4>}, {pipeline_mode = #tpu.pipeline_mode<synchronous>, transform_indices = @transform_2, window_bounds = array<i64: 4, 64>}, {transform_indices = @transform_3, window_bounds = array<i64: 2, 1, 64>}]} {
    %c0 = arith.constant 0 : index
    %c0_0 = arith.constant 0 : index
    %c0_1 = arith.constant 0 : index
    %0 = vector.load %arg2[%c0, %c0_0, %c0_1] : memref<2x64x128xf32, #tpu.memory_space<vmem>>, vector<2x64x128xf32>
    %cst = arith.constant dense<0.000000e+00> : vector<2x64xf32>
    %1 = vector.multi_reduction <add>, %0, %cst [2] : vector<2x64x128xf32> to vector<2x64xf32>
    %cst_2 = arith.constant dense<0xFF800000> : vector<2x64xf32>
    %2 = vector.multi_reduction <maximumf>, %0, %cst_2 [2] : vector<2x64x128xf32> to vector<2x64xf32>
    %c0_i32 = arith.constant 0 : i32
    %3 = arith.cmpi eq, %arg1, %c0_i32 : i32
    %4 = arith.extui %3 : i1 to i32
    %c0_i32_3 = arith.constant 0 : i32
    %5 = arith.cmpi ne, %4, %c0_i32_3 : i32
    scf.if %5 {
      %c0_7 = arith.constant 0 : index
      %c0_8 = arith.constant 0 : index
      %12 = vector.load %arg6[%c0_7, %c0_8] : memref<2x64xf32, #tpu.memory_space<vmem>>, vector<2x64xf32>
      tpu.vector_store %arg6[%c0_7, %c0_8], %1 {strides = array<i32>} : memref<2x64xf32, #tpu.memory_space<vmem>>, vector<2x64xf32>,
      %c0_9 = arith.constant 0 : index
      %c0_10 = arith.constant 0 : index
      %13 = vector.load %arg7[%c0_9, %c0_10] : memref<2x64xf32, #tpu.memory_space<vmem>>, vector<2x64xf32>
      tpu.vector_store %arg7[%c0_9, %c0_10], %2 {strides = array<i32>} : memref<2x64xf32, #tpu.memory_space<vmem>>, vector<2x64xf32>,
    } else {
    }
    %c0_i32_4 = arith.constant 0 : i32
    %6 = arith.cmpi sgt, %arg1, %c0_i32_4 : i32
    %7 = arith.extui %6 : i1 to i32
    %c0_i32_5 = arith.constant 0 : i32
    %8 = arith.cmpi ne, %7, %c0_i32_5 : i32
    scf.if %8 {
      %c0_7 = arith.constant 0 : index
      %c0_8 = arith.constant 0 : index
      %12 = vector.load %arg6[%c0_7, %c0_8] : memref<2x64xf32, #tpu.memory_space<vmem>>, vector<2x64xf32>
      %13 = arith.addf %12, %1 : vector<2x64xf32>
      %c0_9 = arith.constant 0 : index
      %c0_10 = arith.constant 0 : index
      %14 = vector.load %arg6[%c0_9, %c0_10] : memref<2x64xf32, #tpu.memory_space<vmem>>, vector<2x64xf32>
      tpu.vector_store %arg6[%c0_9, %c0_10], %13 {strides = array<i32>} : memref<2x64xf32, #tpu.memory_space<vmem>>, vector<2x64xf32>,
      %c0_11 = arith.constant 0 : index
      %c0_12 = arith.constant 0 : index
      %15 = vector.load %arg7[%c0_11, %c0_12] : memref<2x64xf32, #tpu.memory_space<vmem>>, vector<2x64xf32>
      %16 = arith.maximumf %15, %2 : vector<2x64xf32>
      %c0_13 = arith.constant 0 : index
      %c0_14 = arith.constant 0 : index
      %17 = vector.load %arg7[%c0_13, %c0_14] : memref<2x64xf32, #tpu.memory_space<vmem>>, vector<2x64xf32>
      tpu.vector_store %arg7[%c0_13, %c0_14], %16 {strides = array<i32>} : memref<2x64xf32, #tpu.memory_space<vmem>>, vector<2x64xf32>,
    } else {
    }
    %c1_i32 = arith.constant 1 : i32
    %9 = arith.cmpi eq, %arg1, %c1_i32 : i32
    %10 = arith.extui %9 : i1 to i32
    %c0_i32_6 = arith.constant 0 : i32
    %11 = arith.cmpi ne, %10, %c0_i32_6 : i32
    scf.if %11 {
      %c0_7 = arith.constant 0 : index
      %c0_8 = arith.constant 0 : index
      %12 = vector.load %arg6[%c0_7, %c0_8] : memref<2x64xf32, #tpu.memory_space<vmem>>, vector<2x64xf32>
      %cst_9 = arith.constant 3.906250e-03 : f32
      %13 = vector.broadcast %cst_9 : f32 to vector<2x64xf32>
      %14 = arith.mulf %12, %13 : vector<2x64xf32>
      %c0_10 = arith.constant 0 : index
      %c0_11 = arith.constant 0 : index
      %15 = vector.load %arg7[%c0_10, %c0_11] : memref<2x64xf32, #tpu.memory_space<vmem>>, vector<2x64xf32>
      %16 = tpu.concatenate %14, %15 in 0 : vector<2x64xf32>, vector<2x64xf32> -> vector<4x64xf32>
      %c0_12 = arith.constant 0 : index
      %c0_13 = arith.constant 0 : index
      %17 = vector.load %arg3[%c0_12, %c0_13] : memref<64x4xf32, #tpu.memory_space<vmem>>, vector<64x4xf32>
      %cst_14 = arith.constant dense<0.000000e+00> : vector<4x4xf32>
      %18 = tpu.matmul %16, %17, %cst_14 {dimension_numbers = #tpu.dot_dimension_numbers<[1], [0], [0], [1], [0, 0, 1, 1], [], []>} : vector<4x64xf32>, vector<64x4xf32>, vector<4x4xf32> -> vector<4x4xf32>
      %cst_15 = arith.constant 0.000000e+00 : f32
      %19 = vector.broadcast %cst_15 : f32 to vector<4x4xf32>
      %20 = arith.maximumf %18, %19 : vector<4x4xf32>
      %c0_16 = arith.constant 0 : index
      %c0_17 = arith.constant 0 : index
      %21 = vector.load %arg4[%c0_16, %c0_17] : memref<4x64xf32, #tpu.memory_space<vmem>>, vector<4x64xf32>
      %cst_18 = arith.constant dense<0.000000e+00> : vector<4x64xf32>
      %22 = tpu.matmul %20, %21, %cst_18 {dimension_numbers = #tpu.dot_dimension_numbers<[1], [0], [0], [1], [0, 0, 1, 1], [], []>} : vector<4x4xf32>, vector<4x64xf32>, vector<4x64xf32> -> vector<4x64xf32>
      %23 = vector.extract_strided_slice %22 {offsets = [0, 0], sizes = [2, 64], strides = [1, 1]} : vector<4x64xf32> to vector<2x64xf32>
      %24 = vector.extract_strided_slice %22 {offsets = [2, 0], sizes = [2, 64], strides = [1, 1]} : vector<4x64xf32> to vector<2x64xf32>
      %25 = arith.addf %23, %24 : vector<2x64xf32>
      %26 = arith.negf %25 : vector<2x64xf32>
      %27 = math.exp %26 : vector<2x64xf32>
      %cst_19 = arith.constant 1.000000e+00 : f32
      %28 = vector.broadcast %cst_19 : f32 to vector<2x64xf32>
      %29 = arith.addf %28, %27 : vector<2x64xf32>
      %30 = arith.divf %28, %29 : vector<2x64xf32>
      %31 = vector.shape_cast %30 : vector<2x64xf32> to vector<2x1x64xf32>
      %c0_20 = arith.constant 0 : index
      %c0_21 = arith.constant 0 : index
      %c0_22 = arith.constant 0 : index
      %32 = vector.load %arg5[%c0_20, %c0_21, %c0_22] : memref<2x1x64xf32, #tpu.memory_space<vmem>>, vector<2x1x64xf32>
      tpu.vector_store %arg5[%c0_20, %c0_21, %c0_22], %31 {strides = array<i32>} : memref<2x1x64xf32, #tpu.memory_space<vmem>>, vector<2x1x64xf32>,
    } else {
    }
    return
  }
  func.func @transform_0(%arg0: i32, %arg1: i32) -> (i32, i32, i32) {
    %c0_i32 = arith.constant 0 : i32
    %c0_i32_0 = arith.constant 0 : i32
    return %arg0, %c0_i32, %arg1 : i32, i32, i32
  }
  func.func @transform_1(%arg0: i32, %arg1: i32) -> (i32, i32) {
    %c0_i32 = arith.constant 0 : i32
    %c0_i32_0 = arith.constant 0 : i32
    %c0_i32_1 = arith.constant 0 : i32
    return %c0_i32, %c0_i32_0 : i32, i32
  }
  func.func @transform_2(%arg0: i32, %arg1: i32) -> (i32, i32) {
    %c0_i32 = arith.constant 0 : i32
    %c0_i32_0 = arith.constant 0 : i32
    %c0_i32_1 = arith.constant 0 : i32
    return %c0_i32, %c0_i32_0 : i32, i32
  }
  func.func @transform_3(%arg0: i32, %arg1: i32) -> (i32, i32, i32) {
    %c0_i32 = arith.constant 0 : i32
    %c0_i32_0 = arith.constant 0 : i32
    %c0_i32_1 = arith.constant 0 : i32
    return %arg0, %c0_i32, %c0_i32_0 : i32, i32, i32
  }
}

</mosaic_0001>

<llo_original>
// kernel: tpu_custom_call.1
$region0: #{tpu_custom_call.1}
  #allocation0 [shape = 'u32[]', space=smem, size = 0x4, offset = 0x4, fixed_abs, tag = 'smem constant byte address 0x4 - core index']
  #allocation1 [shape = 'u32[144,128]{1,0:T(1,128)}', space=vmem, size = 0x12000, scoped, tag = 'internal scratch']
  #allocation2 [shape = 'f32[2,64]{1,0:T(2,128)}', space=vmem, size = 0x400, scoped, tag = 'scratch operand']
  #allocation3 [shape = 'f32[2,64]{1,0:T(2,128)}', space=vmem, size = 0x400, scoped, tag = 'scratch operand']
  %s0 = inlined_call_operand.hbm [shape: f32[4,64,256], index: 0, kind: input, shape index: {}]
  %s1 = inlined_call_operand.vmem [shape: f32[64,4], index: 1, kind: input, shape index: {}]
  %s2 = inlined_call_operand.vmem [shape: f32[4,64], index: 2, kind: input, shape index: {}]
  %s3 = inlined_call_operand.hbm [shape: f32[4,1,64], index: 3, kind: output, shape index: {}]
  %s4 = sld [smem:[#allocation0]]
  $region61: #{tpu_custom_call.1} parent=0
    _
  %s6 = ssub.s32 1, %s4
  %s7 = scalar_select 0, %s6, %s4
  $region1: #{tpu_custom_call.1} parent=0
    #allocation4 [shape = 'u8[131072]{0}', space=vmem, size = 0x20000, scoped, tag = 'input window, operand 0']
    #allocation5 [shape = 's32[2]{0}', space=sflag, size = 0x8, scoped, tag = 'scoped memory for tpu_custom_call.1']
    #allocation6 [shape = 's32[2]{0}', space=sflag, size = 0x8, scoped, tag = 'scoped memory for tpu_custom_call.1']
    #allocation7 [shape = 'u8[2048]{0}', space=vmem, size = 0x800, scoped, tag = 'output window, operand 0']
    %8 = vsyncpa [#allocation5], 0
    %s9 = scalar_lea.sflag [#allocation5], 1
    %10 = vsyncpa %s9, 0
    %11 = vsyncpa [#allocation6], 0
    %s12 = scalar_lea.sflag [#allocation6], 1
    %13 = vsyncpa %s12, 0
    loop: start=0, step=1, limit=6
    $region2: #{tpu_custom_call.1} parent=1 // loop_pre_header
      _
    $region3: #{tpu_custom_call.1} parent=1 // loop_header
      %s15 = sphi 0, %s19
      %p16 = scmp.ge.s32.totalorder %s15, 6
      %s22 = sphi 0, %s34
      %s23 = sphi 0, %s30
      %s24 = sphi 0, %s22
      %s25 = sphi 0, %s23
      %s26 = sphi 0, %s24
      %s27 = sphi 0, %s25
      %s39 = sphi 0, %s41
      %s42 = sphi 0, %s39
      %s43 = sphi 0, %s42
      %s59 = sphi 0, %s43
      %s63 = sphi 0, %s63
      %s65 = sphi 0, %s63
      %s66 = sphi 0, %s65
      %s80 = sphi 0, %s66
      %s84 = sphi 0, %s84
      %s86 = sphi 0, %s84
      %s87 = sphi 0, %s86
      %s101 = sphi 0, %s87
      %s107 = sphi 0, %s109
      %s110 = sphi 0, %s107
      %s111 = sphi 0, %s110
      %s127 = sphi 0, %s111
    $region4: #{tpu_custom_call.1} parent=1 // loop_header_branch
      %18 = sbr.rel (%p16) target = $region8
    $region5: #{tpu_custom_call.1} parent=1 // loop_body
      %s20 = ssub.s32 %s15, 1
      %s21 = ssub.s32 %s15, 2
      %s28 = sadd.s32 1, %s23
      %p29 = scmp.ge.s32.totalorder %s28, 2
      %s30 = scalar_select %p29, 0, %s28
      %s31 = sadd.s32 1, %s22
      %s32 = scalar_select %p29, %s31, %s22
      %p33 = scmp.ge.s32.totalorder %s32, 2
      %s34 = scalar_select %p33, 0, %s32
      %s35 = ssub.s32 %s22, %s34
      %s36 = ssub.s32 %s23, %s30
      %s37 = sor.u32 %s35, %s36
      %p38 = scmp.eq.s32.totalorder %s37, 0
      %s40 = sadd.s32 %s39, 1
      %s41 = scalar_select %p38, %s39, %s40
      %p44 = pneg %p38
      %p45 = scmp.eq.s32.totalorder %s15, 3
      %p46 = por %p44, %p45
      %p47 = scmp.ne.s32.totalorder %s39, %s42
      %p48 = scmp.eq.s32.totalorder %s15, 0
      %p49 = por %p47, %p48
      %p50 = scmp.ne.s32.totalorder %s39, %s42
      %p51 = scmp.eq.s32.totalorder %s20, 3
      %p52 = por %p50, %p51
      %p53 = scmp.ne.s32.totalorder %s42, %s43
      %p54 = scmp.eq.s32.totalorder %s20, 0
      %p55 = por %p53, %p54
      %p56 = scmp.ne.s32.totalorder %s42, %s43
      %p57 = scmp.eq.s32.totalorder %s21, 3
      %p58 = por %p56, %p57
      %p60 = scmp.ne.s32.totalorder %s43, %s59
      %p61 = scmp.eq.s32.totalorder %s21, 0
      %p62 = por %p60, %p61
      %s64 = sadd.s32 %s63, 1
      %p67 = scmp.eq.s32.totalorder %s15, 3
      %p68 = scmp.ne.s32.totalorder %s63, %s65
      %p69 = scmp.eq.s32.totalorder %s15, 0
      %p70 = por %p68, %p69
      %p71 = scmp.ne.s32.totalorder %s63, %s65
      %p72 = scmp.eq.s32.totalorder %s20, 3
      %p73 = por %p71, %p72
      %p74 = scmp.ne.s32.totalorder %s65, %s66
      %p75 = scmp.eq.s32.totalorder %s20, 0
      %p76 = por %p74, %p75
      %p77 = scmp.ne.s32.totalorder %s65, %s66
      %p78 = scmp.eq.s32.totalorder %s21, 3
      %p79 = por %p77, %p78
      %p81 = scmp.ne.s32.totalorder %s66, %s80
      %p82 = scmp.eq.s32.totalorder %s21, 0
      %p83 = por %p81, %p82
      %s85 = sadd.s32 %s84, 1
      %p88 = scmp.eq.s32.totalorder %s15, 3
      %p89 = scmp.ne.s32.totalorder %s84, %s86
      %p90 = scmp.eq.s32.totalorder %s15, 0
      %p91 = por %p89, %p90
      %p92 = scmp.ne.s32.totalorder %s84, %s86
      %p93 = scmp.eq.s32.totalorder %s20, 3
      %p94 = por %p92, %p93
      %p95 = scmp.ne.s32.totalorder %s86, %s87
      %p96 = scmp.eq.s32.totalorder %s20, 0
      %p97 = por %p95, %p96
      %p98 = scmp.ne.s32.totalorder %s86, %s87
      %p99 = scmp.eq.s32.totalorder %s21, 3
      %p100 = por %p98, %p99
      %p102 = scmp.ne.s32.totalorder %s87, %s101
      %p103 = scmp.eq.s32.totalorder %s21, 0
      %p104 = por %p102, %p103
      %s105 = ssub.s32 %s22, %s34
      %p106 = scmp.eq.s32.totalorder %s105, 0
      %s108 = sadd.s32 %s107, 1
      %s109 = scalar_select %p106, %s107, %s108
      %p112 = pneg %p106
      %p113 = scmp.eq.s32.totalorder %s15, 3
      %p114 = por %p112, %p113
      %p115 = scmp.ne.s32.totalorder %s107, %s110
      %p116 = scmp.eq.s32.totalorder %s15, 0
      %p117 = por %p115, %p116
      %p118 = scmp.ne.s32.totalorder %s107, %s110
      %p119 = scmp.eq.s32.totalorder %s20, 3
      %p120 = por %p118, %p119
      %p121 = scmp.ne.s32.totalorder %s110, %s111
      %p122 = scmp.eq.s32.totalorder %s20, 0
      %p123 = por %p121, %p122
      %p124 = scmp.ne.s32.totalorder %s110, %s111
      %p125 = scmp.eq.s32.totalorder %s21, 3
      %p126 = por %p124, %p125
      %p128 = scmp.ne.s32.totalorder %s111, %s127
      %p129 = scmp.eq.s32.totalorder %s21, 0
      %p130 = por %p128, %p129
      %p131 = scmp.le.s32.totalorder 1, %s15
      %p132 = scmp.lt.s32.totalorder %s15, 5
      %p133 = pnand %p131, %p132
      %p134 = pneg %p133
      // Predicated region
      $region9: #{tpu_custom_call.1} parent=5 // pred_check
        _
      $region10: #{tpu_custom_call.1} parent=5 // pred_check_branch
        %136 = sbr.rel (%p133) target = $region12
      $region11: #{tpu_custom_call.1} parent=5 // pred_region
        %s137 = ssub.s32 %s15, 1
        // Predicated region
        $region13: #{tpu_custom_call.1} parent=11 // pred_check
          %p138 = pneg %p76
        $region14: #{tpu_custom_call.1} parent=11 // pred_check_branch
          %140 = sbr.rel (%p138) target = $region16
        $region15: #{tpu_custom_call.1} parent=11 // pred_region
          _
        $region16: #{tpu_custom_call.1} parent=11 // pred_fallthru
          _
        // Predicated region
        $region17: #{tpu_custom_call.1} parent=11 // pred_check
          %p141 = pneg %p97
        $region18: #{tpu_custom_call.1} parent=11 // pred_check_branch
          %143 = sbr.rel (%p141) target = $region20
        $region19: #{tpu_custom_call.1} parent=11 // pred_region
          _
        $region20: #{tpu_custom_call.1} parent=11 // pred_fallthru
          _
      $region12: #{tpu_custom_call.1} parent=5 // pred_fallthru
        _
      %p144 = scmp.lt.s32.totalorder %s15, 4
      // Predicated region
      $region21: #{tpu_custom_call.1} parent=5 // pred_check
        %p145 = pneg %p144
      $region22: #{tpu_custom_call.1} parent=5 // pred_check_branch
        %147 = sbr.rel (%p145) target = $region24
      $region23: #{tpu_custom_call.1} parent=5 // pred_region
        // Predicated region
        $region25: #{tpu_custom_call.1} parent=23 // pred_check
          %p148 = pneg %p49
        $region26: #{tpu_custom_call.1} parent=23 // pred_check_branch
          %150 = sbr.rel (%p148) target = $region28
        $region27: #{tpu_custom_call.1} parent=23 // pred_region
          %s151 = sand.u32 %s39, 1
          %s152 = scalar_lea.sflag [#allocation5], %s151
          %s153 = sand.u32 %s39, 1
          %s154 = smul.addr %s153, 128
          %s155 = scalar_lea.vmem [#allocation4], %s154
          %s156 = smul.u32 2, %s22
          %s158 = ssub.s32 2048, 2048
          %159 = vsyncadd %s152, %s158
          %s160 = smul.addr %s156, 16
          %s161 = sadd.s32 %s23, %s160
          %s162 = smul.addr %s161, 128
          %s163 = scalar_lea.hbm %s0, %s162
          %s164 = sshll.u32 %s155, 4
          %s165 = int_to_ptr.vmem [resolvable:$true] %s164
          %170 = dma.hbm_to_vmem [thread:$0]  %s163, 2048, %s165, %s152, 256, 128, 8
        $region28: #{tpu_custom_call.1} parent=23 // pred_fallthru
          _
      $region24: #{tpu_custom_call.1} parent=5 // pred_fallthru
        _
      %p171 = scmp.le.s32.totalorder 1, %s15
      %p172 = scmp.lt.s32.totalorder %s15, 5
      %p173 = pnand %p171, %p172
      %p174 = pneg %p173
      // Predicated region
      $region29: #{tpu_custom_call.1} parent=5 // pred_check
        _
      $region30: #{tpu_custom_call.1} parent=5 // pred_check_branch
        %176 = sbr.rel (%p173) target = $region32
      $region31: #{tpu_custom_call.1} parent=5 // pred_region
        %s177 = ssub.s32 %s15, 1
        %s178 = sand.u32 %s42, 1
        %s179 = scalar_lea.sflag [#allocation5], %s178
        %s180 = sand.u32 %s42, 1
        %s181 = smul.addr %s180, 128
        %s182 = scalar_lea.vmem [#allocation4], %s181
        // Predicated region
        $region33: #{tpu_custom_call.1} parent=31 // pred_check
          %p183 = pneg %p55
        $region34: #{tpu_custom_call.1} parent=31 // pred_check_branch
          %185 = sbr.rel (%p183) target = $region36
        $region35: #{tpu_custom_call.1} parent=31 // pred_region
          %186 = dma.done %s179, 2048
        $region36: #{tpu_custom_call.1} parent=31 // pred_fallthru
          _
        %s187 = sand.u32 %s42, 1
        %s188 = scalar_lea.sflag [#allocation5], %s187
        %s189 = sand.u32 %s42, 1
        %s190 = smul.addr %s189, 128
        %s191 = scalar_lea.vmem [#allocation4], %s190
        %p192 = pneg %p55
        %p193 = pneg %p52
        %p194 = pneg %p76
        %p195 = pneg %p73
        %p196 = pneg %p97
        %p197 = pneg %p94
        %p198 = pneg %p123
        %p199 = pneg %p120
        %s200 = sand.u32 %s110, 1
        %s201 = scalar_lea.sflag [#allocation6], %s200
        %s202 = sand.u32 %s110, 1
        %s203 = smul.addr %s202, 2
        %s204 = scalar_lea.vmem [#allocation7], %s203
        %s205 = smul.u32 2, %s24
        %s206 = smul.u32 2, %s24
        %v207 = vld [vmem:[%s182] sm:$0xff]
        %v208 = vld [vmem:[%s182 + $0x8] sm:$0xff]
        %v209 = vld [vmem:[%s182 + $0x10] sm:$0xff]
        %v210 = vld [vmem:[%s182 + $0x18] sm:$0xff]
        %v211 = vld [vmem:[%s182 + $0x20] sm:$0xff]
        %v212 = vld [vmem:[%s182 + $0x28] sm:$0xff]
        %v213 = vld [vmem:[%s182 + $0x30] sm:$0xff]
        %v214 = vld [vmem:[%s182 + $0x38] sm:$0xff]
        %v215 = vld [vmem:[%s182 + $0x40] sm:$0xff]
        %v216 = vld [vmem:[%s182 + $0x48] sm:$0xff]
        %v217 = vld [vmem:[%s182 + $0x50] sm:$0xff]
        %v218 = vld [vmem:[%s182 + $0x58] sm:$0xff]
        %v219 = vld [vmem:[%s182 + $0x60] sm:$0xff]
        %v220 = vld [vmem:[%s182 + $0x68] sm:$0xff]
        %v221 = vld [vmem:[%s182 + $0x70] sm:$0xff]
        %v222 = vld [vmem:[%s182 + $0x78] sm:$0xff]
        %223 = vadd.xlane.f32.xlu0 %v207
        %v224 = vpop.xlane.xlu0 %223
        %225 = vadd.xlane.f32.xlu0 %v208
        %v226 = vpop.xlane.xlu0 %225
        %227 = vadd.xlane.f32.xlu0 %v209
        %v228 = vpop.xlane.xlu0 %227
        %229 = vadd.xlane.f32.xlu0 %v210
        %v230 = vpop.xlane.xlu0 %229
        %231 = vadd.xlane.f32.xlu0 %v211
        %v232 = vpop.xlane.xlu0 %231
        %233 = vadd.xlane.f32.xlu0 %v212
        %v234 = vpop.xlane.xlu0 %233
        %235 = vadd.xlane.f32.xlu0 %v213
        %v236 = vpop.xlane.xlu0 %235
        %237 = vadd.xlane.f32.xlu0 %v214
        %v238 = vpop.xlane.xlu0 %237
        %239 = vadd.xlane.f32.xlu0 %v215
        %v240 = vpop.xlane.xlu0 %239
        %241 = vadd.xlane.f32.xlu0 %v216
        %v242 = vpop.xlane.xlu0 %241
        %243 = vadd.xlane.f32.xlu0 %v217
        %v244 = vpop.xlane.xlu0 %243
        %245 = vadd.xlane.f32.xlu0 %v218
        %v246 = vpop.xlane.xlu0 %245
        %247 = vadd.xlane.f32.xlu0 %v219
        %v248 = vpop.xlane.xlu0 %247
        %249 = vadd.xlane.f32.xlu0 %v220
        %v250 = vpop.xlane.xlu0 %249
        %251 = vadd.xlane.f32.xlu0 %v221
        %v252 = vpop.xlane.xlu0 %251
        %253 = vadd.xlane.f32.xlu0 %v222
        %v254 = vpop.xlane.xlu0 %253
        %255 = vmax.xlane.f32.xlu0 %v207
        %v256 = vpop.xlane.xlu0 %255
        %257 = vmax.xlane.f32.xlu0 %v208
        %v258 = vpop.xlane.xlu0 %257
        %259 = vmax.xlane.f32.xlu0 %v209
        %v260 = vpop.xlane.xlu0 %259
        %261 = vmax.xlane.f32.xlu0 %v210
        %v262 = vpop.xlane.xlu0 %261
        %263 = vmax.xlane.f32.xlu0 %v211
        %v264 = vpop.xlane.xlu0 %263
        %265 = vmax.xlane.f32.xlu0 %v212
        %v266 = vpop.xlane.xlu0 %265
        %267 = vmax.xlane.f32.xlu0 %v213
        %v268 = vpop.xlane.xlu0 %267
        %269 = vmax.xlane.f32.xlu0 %v214
        %v270 = vpop.xlane.xlu0 %269
        %271 = vmax.xlane.f32.xlu0 %v215
        %v272 = vpop.xlane.xlu0 %271
        %273 = vmax.xlane.f32.xlu0 %v216
        %v274 = vpop.xlane.xlu0 %273
        %275 = vmax.xlane.f32.xlu0 %v217
        %v276 = vpop.xlane.xlu0 %275
        %277 = vmax.xlane.f32.xlu0 %v218
        %v278 = vpop.xlane.xlu0 %277
        %279 = vmax.xlane.f32.xlu0 %v219
        %v280 = vpop.xlane.xlu0 %279
        %281 = vmax.xlane.f32.xlu0 %v220
        %v282 = vpop.xlane.xlu0 %281
        %283 = vmax.xlane.f32.xlu0 %v221
        %v284 = vpop.xlane.xlu0 %283
        %285 = vmax.xlane.f32.xlu0 %v222
        %v286 = vpop.xlane.xlu0 %285
        %p287 = scmp.eq.s32.totalorder %s25, 0
        // Predicated region
        $region37: #{tpu_custom_call.1} parent=31 // pred_check
          %p288 = pneg %p287
        $region38: #{tpu_custom_call.1} parent=31 // pred_check_branch
          %290 = sbr.rel (%p288) target = $region40
        $region39: #{tpu_custom_call.1} parent=31 // pred_region
          %v307 = vlaneseq
          %v308 = vand.u32 %v307, 127
          %v309 = vlaneseq
          %v310 = vshrl.u32 %v309, 7
          %v311 = vsub.s32 %v308, %v310
          %v312 = vrot.slane %v224, %v311
          %v313 = vadd.s32 %v308, 4294967288
          %v314 = vlaneseq
          %v315 = vshrl.u32 %v314, 7
          %v316 = vsub.s32 %v313, %v315
          %v317 = vrot.slane %v226, %v316
          %vm318 = vcmask 130112
          %v319 = vsel %vm318, %v317, %v312
          %v320 = vadd.s32 %v308, 4294967280
          %v321 = vlaneseq
          %v322 = vshrl.u32 %v321, 7
          %v323 = vsub.s32 %v320, %v322
          %v324 = vrot.slane %v228, %v323
          %vm325 = vcmask 195712
          %v326 = vsel %vm325, %v324, %v319
          %v327 = vadd.s32 %v308, 4294967272
          %v328 = vlaneseq
          %v329 = vshrl.u32 %v328, 7
          %v330 = vsub.s32 %v327, %v329
          %v331 = vrot.slane %v230, %v330
          %vm332 = vcmask 261312
          %v333 = vsel %vm332, %v331, %v326
          %v334 = vadd.s32 %v308, 4294967264
          %v335 = vlaneseq
          %v336 = vshrl.u32 %v335, 7
          %v337 = vsub.s32 %v334, %v336
          %v338 = vrot.slane %v232, %v337
          %vm339 = vcmask 326912
          %v340 = vsel %vm339, %v338, %v333
          %v341 = vadd.s32 %v308, 4294967256
          %v342 = vlaneseq
          %v343 = vshrl.u32 %v342, 7
          %v344 = vsub.s32 %v341, %v343
          %v345 = vrot.slane %v234, %v344
          %vm346 = vcmask 392512
          %v347 = vsel %vm346, %v345, %v340
          %v348 = vadd.s32 %v308, 4294967248
          %v349 = vlaneseq
          %v350 = vshrl.u32 %v349, 7
          %v351 = vsub.s32 %v348, %v350
          %v352 = vrot.slane %v236, %v351
          %vm353 = vcmask 458112
          %v354 = vsel %vm353, %v352, %v347
          %v355 = vadd.s32 %v308, 4294967240
          %v356 = vlaneseq
          %v357 = vshrl.u32 %v356, 7
          %v358 = vsub.s32 %v355, %v357
          %v359 = vrot.slane %v238, %v358
          %vm360 = vcmask 523712
          %v361 = vsel %vm360, %v359, %v354
          %v362 = vlaneseq
          %v363 = vshrl.u32 %v362, 7
          %v364 = vsub.s32 %v308, %v363
          %v365 = vrot.slane %v240, %v364
          %v366 = vlaneseq
          %v367 = vshrl.u32 %v366, 7
          %v368 = vsub.s32 %v313, %v367
          %v369 = vrot.slane %v242, %v368
          %v370 = vsel %vm318, %v369, %v365
          %v371 = vlaneseq
          %v372 = vshrl.u32 %v371, 7
          %v373 = vsub.s32 %v320, %v372
          %v374 = vrot.slane %v244, %v373
          %v375 = vsel %vm325, %v374, %v370
          %v376 = vlaneseq
          %v377 = vshrl.u32 %v376, 7
          %v378 = vsub.s32 %v327, %v377
          %v379 = vrot.slane %v246, %v378
          %v380 = vsel %vm332, %v379, %v375
          %v381 = vlaneseq
          %v382 = vshrl.u32 %v381, 7
          %v383 = vsub.s32 %v334, %v382
          %v384 = vrot.slane %v248, %v383
          %v385 = vsel %vm339, %v384, %v380
          %v386 = vlaneseq
          %v387 = vshrl.u32 %v386, 7
          %v388 = vsub.s32 %v341, %v387
          %v389 = vrot.slane %v250, %v388
          %v390 = vsel %vm346, %v389, %v385
          %v391 = vlaneseq
          %v392 = vshrl.u32 %v391, 7
          %v393 = vsub.s32 %v348, %v392
          %v394 = vrot.slane %v252, %v393
          %v395 = vsel %vm353, %v394, %v390
          %v396 = vlaneseq
          %v397 = vshrl.u32 %v396, 7
          %v398 = vsub.s32 %v355, %v397
          %v399 = vrot.slane %v254, %v398
          %v400 = vsel %vm360, %v399, %v395
          %vm401 = vcmask 1041409
          %v402 = vsel %vm401, %v400, %v361
          %vm404 = vcmask 517120
          %405 = vst.msk [vmem:[#allocation2] sm:$0x3] %vm404, %v402
          %v422 = vlaneseq
          %v423 = vshrl.u32 %v422, 7
          %v424 = vsub.s32 %v308, %v423
          %v425 = vrot.slane %v256, %v424
          %v426 = vlaneseq
          %v427 = vshrl.u32 %v426, 7
          %v428 = vsub.s32 %v313, %v427
          %v429 = vrot.slane %v258, %v428
          %v430 = vsel %vm318, %v429, %v425
          %v431 = vlaneseq
          %v432 = vshrl.u32 %v431, 7
          %v433 = vsub.s32 %v320, %v432
          %v434 = vrot.slane %v260, %v433
          %v435 = vsel %vm325, %v434, %v430
          %v436 = vlaneseq
          %v437 = vshrl.u32 %v436, 7
          %v438 = vsub.s32 %v327, %v437
          %v439 = vrot.slane %v262, %v438
          %v440 = vsel %vm332, %v439, %v435
          %v441 = vlaneseq
          %v442 = vshrl.u32 %v441, 7
          %v443 = vsub.s32 %v334, %v442
          %v444 = vrot.slane %v264, %v443
          %v445 = vsel %vm339, %v444, %v440
          %v446 = vlaneseq
          %v447 = vshrl.u32 %v446, 7
          %v448 = vsub.s32 %v341, %v447
          %v449 = vrot.slane %v266, %v448
          %v450 = vsel %vm346, %v449, %v445
          %v451 = vlaneseq
          %v452 = vshrl.u32 %v451, 7
          %v453 = vsub.s32 %v348, %v452
          %v454 = vrot.slane %v268, %v453
          %v455 = vsel %vm353, %v454, %v450
          %v456 = vlaneseq
          %v457 = vshrl.u32 %v456, 7
          %v458 = vsub.s32 %v355, %v457
          %v459 = vrot.slane %v270, %v458
          %v460 = vsel %vm360, %v459, %v455
          %v461 = vlaneseq
          %v462 = vshrl.u32 %v461, 7
          %v463 = vsub.s32 %v308, %v462
          %v464 = vrot.slane %v272, %v463
          %v465 = vlaneseq
          %v466 = vshrl.u32 %v465, 7
          %v467 = vsub.s32 %v313, %v466
          %v468 = vrot.slane %v274, %v467
          %v469 = vsel %vm318, %v468, %v464
          %v470 = vlaneseq
          %v471 = vshrl.u32 %v470, 7
          %v472 = vsub.s32 %v320, %v471
          %v473 = vrot.slane %v276, %v472
          %v474 = vsel %vm325, %v473, %v469
          %v475 = vlaneseq
          %v476 = vshrl.u32 %v475, 7
          %v477 = vsub.s32 %v327, %v476
          %v478 = vrot.slane %v278, %v477
          %v479 = vsel %vm332, %v478, %v474
          %v480 = vlaneseq
          %v481 = vshrl.u32 %v480, 7
          %v482 = vsub.s32 %v334, %v481
          %v483 = vrot.slane %v280, %v482
          %v484 = vsel %vm339, %v483, %v479
          %v485 = vlaneseq
          %v486 = vshrl.u32 %v485, 7
          %v487 = vsub.s32 %v341, %v486
          %v488 = vrot.slane %v282, %v487
          %v489 = vsel %vm346, %v488, %v484
          %v490 = vlaneseq
          %v491 = vshrl.u32 %v490, 7
          %v492 = vsub.s32 %v348, %v491
          %v493 = vrot.slane %v284, %v492
          %v494 = vsel %vm353, %v493, %v489
          %v495 = vlaneseq
          %v496 = vshrl.u32 %v495, 7
          %v497 = vsub.s32 %v355, %v496
          %v498 = vrot.slane %v286, %v497
          %v499 = vsel %vm360, %v498, %v494
          %v500 = vsel %vm401, %v499, %v460
          %502 = vst.msk [vmem:[#allocation3] sm:$0x3] %vm404, %v500
        $region40: #{tpu_custom_call.1} parent=31 // pred_fallthru
          _
        %p503 = scmp.gt.s32.totalorder %s25, 0
        // Predicated region
        $region41: #{tpu_custom_call.1} parent=31 // pred_check
          %p504 = pneg %p503
        $region42: #{tpu_custom_call.1} parent=31 // pred_check_branch
          %506 = sbr.rel (%p504) target = $region44
        $region43: #{tpu_custom_call.1} parent=31 // pred_region
          %v507 = vld [vmem:[#allocation2] sm:$0x3]
          %v524 = vlaneseq
          %v525 = vand.u32 %v524, 127
          %v526 = vlaneseq
          %v527 = vshrl.u32 %v526, 7
          %v528 = vsub.s32 %v525, %v527
          %v529 = vrot.slane %v224, %v528
          %v530 = vadd.s32 %v525, 4294967288
          %v531 = vlaneseq
          %v532 = vshrl.u32 %v531, 7
          %v533 = vsub.s32 %v530, %v532
          %v534 = vrot.slane %v226, %v533
          %vm535 = vcmask 130112
          %v536 = vsel %vm535, %v534, %v529
          %v537 = vadd.s32 %v525, 4294967280
          %v538 = vlaneseq
          %v539 = vshrl.u32 %v538, 7
          %v540 = vsub.s32 %v537, %v539
          %v541 = vrot.slane %v228, %v540
          %vm542 = vcmask 195712
          %v543 = vsel %vm542, %v541, %v536
          %v544 = vadd.s32 %v525, 4294967272
          %v545 = vlaneseq
          %v546 = vshrl.u32 %v545, 7
          %v547 = vsub.s32 %v544, %v546
          %v548 = vrot.slane %v230, %v547
          %vm549 = vcmask 261312
          %v550 = vsel %vm549, %v548, %v543
          %v551 = vadd.s32 %v525, 4294967264
          %v552 = vlaneseq
          %v553 = vshrl.u32 %v552, 7
          %v554 = vsub.s32 %v551, %v553
          %v555 = vrot.slane %v232, %v554
          %vm556 = vcmask 326912
          %v557 = vsel %vm556, %v555, %v550
          %v558 = vadd.s32 %v525, 4294967256
          %v559 = vlaneseq
          %v560 = vshrl.u32 %v559, 7
          %v561 = vsub.s32 %v558, %v560
          %v562 = vrot.slane %v234, %v561
          %vm563 = vcmask 392512
          %v564 = vsel %vm563, %v562, %v557
          %v565 = vadd.s32 %v525, 4294967248
          %v566 = vlaneseq
          %v567 = vshrl.u32 %v566, 7
          %v568 = vsub.s32 %v565, %v567
          %v569 = vrot.slane %v236, %v568
          %vm570 = vcmask 458112
          %v571 = vsel %vm570, %v569, %v564
          %v572 = vadd.s32 %v525, 4294967240
          %v573 = vlaneseq
          %v574 = vshrl.u32 %v573, 7
          %v575 = vsub.s32 %v572, %v574
          %v576 = vrot.slane %v238, %v575
          %vm577 = vcmask 523712
          %v578 = vsel %vm577, %v576, %v571
          %v579 = vlaneseq
          %v580 = vshrl.u32 %v579, 7
          %v581 = vsub.s32 %v525, %v580
          %v582 = vrot.slane %v240, %v581
          %v583 = vlaneseq
          %v584 = vshrl.u32 %v583, 7
          %v585 = vsub.s32 %v530, %v584
          %v586 = vrot.slane %v242, %v585
          %v587 = vsel %vm535, %v586, %v582
          %v588 = vlaneseq
          %v589 = vshrl.u32 %v588, 7
          %v590 = vsub.s32 %v537, %v589
          %v591 = vrot.slane %v244, %v590
          %v592 = vsel %vm542, %v591, %v587
          %v593 = vlaneseq
          %v594 = vshrl.u32 %v593, 7
          %v595 = vsub.s32 %v544, %v594
          %v596 = vrot.slane %v246, %v595
          %v597 = vsel %vm549, %v596, %v592
          %v598 = vlaneseq
          %v599 = vshrl.u32 %v598, 7
          %v600 = vsub.s32 %v551, %v599
          %v601 = vrot.slane %v248, %v600
          %v602 = vsel %vm556, %v601, %v597
          %v603 = vlaneseq
          %v604 = vshrl.u32 %v603, 7
          %v605 = vsub.s32 %v558, %v604
          %v606 = vrot.slane %v250, %v605
          %v607 = vsel %vm563, %v606, %v602
          %v608 = vlaneseq
          %v609 = vshrl.u32 %v608, 7
          %v610 = vsub.s32 %v565, %v609
          %v611 = vrot.slane %v252, %v610
          %v612 = vsel %vm570, %v611, %v607
          %v613 = vlaneseq
          %v614 = vshrl.u32 %v613, 7
          %v615 = vsub.s32 %v572, %v614
          %v616 = vrot.slane %v254, %v615
          %v617 = vsel %vm577, %v616, %v612
          %vm618 = vcmask 1041409
          %v619 = vsel %vm618, %v617, %v578
          %v621 = vadd.f32 %v507, %v619
          %vm622 = vcmask 517120
          %623 = vst.msk [vmem:[#allocation2] sm:$0x3] %vm622, %v621
          %v624 = vld [vmem:[#allocation3] sm:$0x3]
          %v641 = vlaneseq
          %v642 = vshrl.u32 %v641, 7
          %v643 = vsub.s32 %v525, %v642
          %v644 = vrot.slane %v256, %v643
          %v645 = vlaneseq
          %v646 = vshrl.u32 %v645, 7
          %v647 = vsub.s32 %v530, %v646
          %v648 = vrot.slane %v258, %v647
          %v649 = vsel %vm535, %v648, %v644
          %v650 = vlaneseq
          %v651 = vshrl.u32 %v650, 7
          %v652 = vsub.s32 %v537, %v651
          %v653 = vrot.slane %v260, %v652
          %v654 = vsel %vm542, %v653, %v649
          %v655 = vlaneseq
          %v656 = vshrl.u32 %v655, 7
          %v657 = vsub.s32 %v544, %v656
          %v658 = vrot.slane %v262, %v657
          %v659 = vsel %vm549, %v658, %v654
          %v660 = vlaneseq
          %v661 = vshrl.u32 %v660, 7
          %v662 = vsub.s32 %v551, %v661
          %v663 = vrot.slane %v264, %v662
          %v664 = vsel %vm556, %v663, %v659
          %v665 = vlaneseq
          %v666 = vshrl.u32 %v665, 7
          %v667 = vsub.s32 %v558, %v666
          %v668 = vrot.slane %v266, %v667
          %v669 = vsel %vm563, %v668, %v664
          %v670 = vlaneseq
          %v671 = vshrl.u32 %v670, 7
          %v672 = vsub.s32 %v565, %v671
          %v673 = vrot.slane %v268, %v672
          %v674 = vsel %vm570, %v673, %v669
          %v675 = vlaneseq
          %v676 = vshrl.u32 %v675, 7
          %v677 = vsub.s32 %v572, %v676
          %v678 = vrot.slane %v270, %v677
          %v679 = vsel %vm577, %v678, %v674
          %v680 = vlaneseq
          %v681 = vshrl.u32 %v680, 7
          %v682 = vsub.s32 %v525, %v681
          %v683 = vrot.slane %v272, %v682
          %v684 = vlaneseq
          %v685 = vshrl.u32 %v684, 7
          %v686 = vsub.s32 %v530, %v685
          %v687 = vrot.slane %v274, %v686
          %v688 = vsel %vm535, %v687, %v683
          %v689 = vlaneseq
          %v690 = vshrl.u32 %v689, 7
          %v691 = vsub.s32 %v537, %v690
          %v692 = vrot.slane %v276, %v691
          %v693 = vsel %vm542, %v692, %v688
          %v694 = vlaneseq
          %v695 = vshrl.u32 %v694, 7
          %v696 = vsub.s32 %v544, %v695
          %v697 = vrot.slane %v278, %v696
          %v698 = vsel %vm549, %v697, %v693
          %v699 = vlaneseq
          %v700 = vshrl.u32 %v699, 7
          %v701 = vsub.s32 %v551, %v700
          %v702 = vrot.slane %v280, %v701
          %v703 = vsel %vm556, %v702, %v698
          %v704 = vlaneseq
          %v705 = vshrl.u32 %v704, 7
          %v706 = vsub.s32 %v558, %v705
          %v707 = vrot.slane %v282, %v706
          %v708 = vsel %vm563, %v707, %v703
          %v709 = vlaneseq
          %v710 = vshrl.u32 %v709, 7
          %v711 = vsub.s32 %v565, %v710
          %v712 = vrot.slane %v284, %v711
          %v713 = vsel %vm570, %v712, %v708
          %v714 = vlaneseq
          %v715 = vshrl.u32 %v714, 7
          %v716 = vsub.s32 %v572, %v715
          %v717 = vrot.slane %v286, %v716
          %v718 = vsel %vm577, %v717, %v713
          %v719 = vsel %vm618, %v718, %v679
          %v721 = vmax.f32 %v624, %v719
          %722 = vst.msk [vmem:[#allocation3] sm:$0x3] %vm622, %v721
        $region44: #{tpu_custom_call.1} parent=31 // pred_fallthru
          _
        %p723 = scmp.eq.s32.totalorder %s25, 1
        // Predicated region
        $region45: #{tpu_custom_call.1} parent=31 // pred_check
          %p724 = pneg %p723
        $region46: #{tpu_custom_call.1} parent=31 // pred_check_branch
          %726 = sbr.rel (%p724) target = $region48
        $region47: #{tpu_custom_call.1} parent=31 // pred_region
          %v727 = vld [vmem:[#allocation2] sm:$0x3]
          %v728 = vmul.f32 %v727, 0.00390625
          %v729 = vld [vmem:[#allocation3] sm:$0x3]
          %v731 = vrot.slane %v729, 6
          %vm733 = vcmask 1041408
          %v734 = vsel %vm733, %v728, %v731
          %v735 = vld [vmem:[%s1] sm:$0xff]
          %v736 = vld [vmem:[%s1 + $0x8] sm:$0xff]
          %v737 = vld [vmem:[%s1 + $0x10] sm:$0xff]
          %v738 = vld [vmem:[%s1 + $0x18] sm:$0xff]
          %v739 = vld [vmem:[%s1 + $0x20] sm:$0xff]
          %v740 = vld [vmem:[%s1 + $0x28] sm:$0xff]
          %v741 = vld [vmem:[%s1 + $0x30] sm:$0xff]
          %v742 = vld [vmem:[%s1 + $0x38] sm:$0xff]
          %vm743 = vcmask 523264
          %v745 = vsel %vm743, %v734, 0
          %747 = vmatprep.subr.mxu0 0.0
          %748 = vmatpush1.msra.mxu0 %v735
          %749 = vmatprep.subr.mxu0 0.0
          %750 = vmatpush1.msra.mxu0 %v736
          %751 = vmatprep.subr.mxu0 0.0
          %752 = vmatpush1.msra.mxu0 %v737
          %753 = vmatprep.subr.mxu0 0.0
          %754 = vmatpush1.msra.mxu0 %v738
          %755 = vmatprep.subr.mxu0 0.0
          %756 = vmatpush1.msra.mxu0 %v739
          %757 = vmatprep.subr.mxu0 0.0
          %758 = vmatpush1.msra.mxu0 %v740
          %759 = vmatprep.subr.mxu0 0.0
          %760 = vmatpush1.msra.mxu0 %v741
          %761 = vmatprep.subr.mxu0 0.0
          %762 = vmatpush1.msra.mxu0 %v742
          %763 = vmatprep.subr.mxu0 0.0
          %764 = vmatpush1.msra.mxu0 0.0
          %765 = vmatprep.subr.mxu0 0.0
          %766 = vmatpush1.msra.mxu0 0.0
          %767 = vmatprep.subr.mxu0 0.0
          %768 = vmatpush1.msra.mxu0 0.0
          %769 = vmatprep.subr.mxu0 0.0
          %770 = vmatpush1.msra.mxu0 0.0
          %771 = vmatprep.subr.mxu0 0.0
          %772 = vmatpush1.msra.mxu0 0.0
          %773 = vmatprep.subr.mxu0 0.0
          %774 = vmatpush1.msra.mxu0 0.0
          %775 = vmatprep.subr.mxu0 0.0
          %776 = vmatpush1.msra.mxu0 0.0
          %777 = vmatprep.subr.mxu0 0.0
          %778 = vmatpush1.msra.mxu0 0.0
          %779 = vmatprep.subr.mxu0 0.0
          %780 = vmatpush1.msra.mxu0 0.0
          %781 = vmatprep.subr.mxu0 0.0
          %782 = vmatpush1.msra.mxu0 0.0
          %783 = vmatprep.subr.mxu0 0.0
          %784 = vmatpush1.msra.mxu0 0.0
          %785 = vmatprep.subr.mxu0 0.0
          %786 = vmatpush1.msra.mxu0 0.0
          %787 = vmatprep.subr.mxu0 0.0
          %788 = vmatpush1.msra.mxu0 0.0
          %789 = vmatprep.subr.mxu0 0.0
          %790 = vmatpush1.msra.mxu0 0.0
          %791 = vmatprep.subr.mxu0 0.0
          %792 = vmatpush1.msra.mxu0 0.0
          %793 = vmatprep.subr.mxu0 0.0
          %794 = vmatpush1.msra.mxu0 0.0
          %795 = vmatprep.subr.mxu0 0.0
          %796 = vmatpush1.msra.mxu0 0.0
          %797 = vmatprep.subr.mxu0 0.0
          %798 = vmatpush1.msra.mxu0 0.0
          %799 = vmatprep.subr.mxu0 0.0
          %800 = vmatpush1.msra.mxu0 0.0
          %801 = vmatprep.subr.mxu0 0.0
          %802 = vmatpush1.msra.mxu0 0.0
          %803 = vmatprep.subr.mxu0 0.0
          %804 = vmatpush1.msra.mxu0 0.0
          %805 = vmatprep.subr.mxu0 0.0
          %806 = vmatpush1.msra.mxu0 0.0
          %807 = vmatprep.subr.mxu0 0.0
          %808 = vmatpush1.msra.mxu0 0.0
          %809 = vmatprep.subr.mxu0 0.0
          %810 = vmatpush1.msra.mxu0 0.0
          %811 = vmatprep.mubr.f32.mxu0 0.0
          %812 = vmatmul.mubr.f32.gmra.mrb[0].mxu0 %v745
          %v813 = vpop.f32.mrb[0].mxu0
          %v814 = vadd.f32 0.0, %v813
          %v815 = vpop.f32.mrb[0].mxu0
          %816 = vdwg.mxu0
          %v817 = vmax.f32 %v814, 0.0
          %v818 = vld [vmem:[%s2] sm:$0xf]
          %vm819 = vcmask 31744
          %v821 = vsel %vm819, %v817, 0
          %vm823 = vcmask 1043456
          %v825 = vsel %vm823, %v818, 0
          %827 = vmatprep.subr.mxu0 0.0
          %828 = vmatpush1.msra.mxu0 %v825
          %829 = vmatprep.subr.mxu0 0.0
          %830 = vmatpush1.msra.mxu0 0.0
          %831 = vmatprep.subr.mxu0 0.0
          %832 = vmatpush1.msra.mxu0 0.0
          %833 = vmatprep.subr.mxu0 0.0
          %834 = vmatpush1.msra.mxu0 0.0
          %835 = vmatprep.subr.mxu0 0.0
          %836 = vmatpush1.msra.mxu0 0.0
          %837 = vmatprep.subr.mxu0 0.0
          %838 = vmatpush1.msra.mxu0 0.0
          %839 = vmatprep.subr.mxu0 0.0
          %840 = vmatpush1.msra.mxu0 0.0
          %841 = vmatprep.subr.mxu0 0.0
          %842 = vmatpush1.msra.mxu0 0.0
          %843 = vmatprep.subr.mxu0 0.0
          %844 = vmatpush1.msra.mxu0 0.0
          %845 = vmatprep.subr.mxu0 0.0
          %846 = vmatpush1.msra.mxu0 0.0
          %847 = vmatprep.subr.mxu0 0.0
          %848 = vmatpush1.msra.mxu0 0.0
          %849 = vmatprep.subr.mxu0 0.0
          %850 = vmatpush1.msra.mxu0 0.0
          %851 = vmatprep.subr.mxu0 0.0
          %852 = vmatpush1.msra.mxu0 0.0
          %853 = vmatprep.subr.mxu0 0.0
          %854 = vmatpush1.msra.mxu0 0.0
          %855 = vmatprep.subr.mxu0 0.0
          %856 = vmatpush1.msra.mxu0 0.0
          %857 = vmatprep.subr.mxu0 0.0
          %858 = vmatpush1.msra.mxu0 0.0
          %859 = vmatprep.subr.mxu0 0.0
          %860 = vmatpush1.msra.mxu0 0.0
          %861 = vmatprep.subr.mxu0 0.0
          %862 = vmatpush1.msra.mxu0 0.0
          %863 = vmatprep.subr.mxu0 0.0
          %864 = vmatpush1.msra.mxu0 0.0
          %865 = vmatprep.subr.mxu0 0.0
          %866 = vmatpush1.msra.mxu0 0.0
          %867 = vmatprep.subr.mxu0 0.0
          %868 = vmatpush1.msra.mxu0 0.0
          %869 = vmatprep.subr.mxu0 0.0
          %870 = vmatpush1.msra.mxu0 0.0
          %871 = vmatprep.subr.mxu0 0.0
          %872 = vmatpush1.msra.mxu0 0.0
          %873 = vmatprep.subr.mxu0 0.0
          %874 = vmatpush1.msra.mxu0 0.0
          %875 = vmatprep.subr.mxu0 0.0
          %876 = vmatpush1.msra.mxu0 0.0
          %877 = vmatprep.subr.mxu0 0.0
          %878 = vmatpush1.msra.mxu0 0.0
          %879 = vmatprep.subr.mxu0 0.0
          %880 = vmatpush1.msra.mxu0 0.0
          %881 = vmatprep.subr.mxu0 0.0
          %882 = vmatpush1.msra.mxu0 0.0
          %883 = vmatprep.subr.mxu0 0.0
          %884 = vmatpush1.msra.mxu0 0.0
          %885 = vmatprep.subr.mxu0 0.0
          %886 = vmatpush1.msra.mxu0 0.0
          %887 = vmatprep.subr.mxu0 0.0
          %888 = vmatpush1.msra.mxu0 0.0
          %889 = vmatprep.subr.mxu0 0.0
          %890 = vmatpush1.msra.mxu0 0.0
          %891 = vmatprep.mubr.f32.mxu0 0.0
          %892 = vmatmul.mubr.f32.gmra.mrb[0].mxu0 %v821
          %v893 = vpop.f32.mrb[0].mxu0
          %v894 = vadd.f32 0.0, %v893
          %v895 = vpop.f32.mrb[0].mxu0
          %896 = vdwg.mxu0
          %v898 = vrot.slane %v894, 2
          %v900 = vadd.f32 %v894, %v898
          %v901 = vxor.u32 %v900, 2147483648
          %v902 = vmul.f32 %v901, 1.442695
          %v903 = vpow.pop %v902
          %v904 = vadd.f32 %v903, 1.0
          %v905 = vrcp.pop %v904
          %v906 = vmul.f32 1.0, %v905
          %v909 = vunpack.c.l.s4 1966171168
          %v910 = vunpack.c.0.s8 %v909
          %v911 = vlaneseq
          %v912 = vshrl.u32 %v911, 7
          %v913 = vsub.s32 %v910, %v912
          %v914 = vrot.slane %v906, %v913
          %v915 = vcombine.high %v914, %v914
          %v917 = vunpack.c.l.s4 1966171168
          %v918 = vunpack.c.0.s8 %v917
          %v919 = vlaneseq
          %v920 = vshrl.u32 %v919, 7
          %v921 = vsub.s32 %v918, %v920
          %v922 = vrot.slane %v914, %v921
          %v924 = vunpack.c.l.s4 1966171168
          %v925 = vunpack.c.0.s8 %v924
          %v926 = vlaneseq
          %v927 = vshrl.u32 %v926, 7
          %v928 = vsub.s32 %v925, %v927
          %v929 = vrot.slane %v915, %v928
          %vm932 = vcmask 516096
          %933 = vst.msk [vmem:[%s204] sm:$0x1] %vm932, %v922
          %934 = vst.msk [vmem:[%s204 + $0x1] sm:$0x1] %vm932, %v929
        $region48: #{tpu_custom_call.1} parent=31 // pred_fallthru
          _
        %s935 = sand.u32 %s110, 1
        %s936 = scalar_lea.sflag [#allocation6], %s935
        %s937 = sand.u32 %s110, 1
        %s938 = smul.addr %s937, 2
        %s939 = scalar_lea.vmem [#allocation7], %s938
        // Predicated region
        $region49: #{tpu_custom_call.1} parent=31 // pred_check
          %p940 = pneg %p120
        $region50: #{tpu_custom_call.1} parent=31 // pred_check_branch
          %942 = sbr.rel (%p940) target = $region52
        $region51: #{tpu_custom_call.1} parent=31 // pred_region
          %s943 = smul.u32 2, %s24
          %s945 = ssub.s32 32, 32
          %946 = vsyncadd %s936, %s945
          %s947 = smul.addr %s943, 16
          %s948 = scalar_lea.hbm %s3, %s947
          %s949 = sshll.u32 %s939, 4
          %s950 = int_to_ptr.vmem [resolvable:$true] %s949
          %955 = dma.vmem_to_hbm [thread:$0]  %s950, 32, %s948, %s936, 16, 16, 1
        $region52: #{tpu_custom_call.1} parent=31 // pred_fallthru
          _
      $region32: #{tpu_custom_call.1} parent=5 // pred_fallthru
        _
      %p956 = scmp.le.s32.totalorder 2, %s15
      // Predicated region
      $region53: #{tpu_custom_call.1} parent=5 // pred_check
        %p957 = pneg %p956
      $region54: #{tpu_custom_call.1} parent=5 // pred_check_branch
        %959 = sbr.rel (%p957) target = $region56
      $region55: #{tpu_custom_call.1} parent=5 // pred_region
        %s960 = ssub.s32 %s15, 2
        // Predicated region
        $region57: #{tpu_custom_call.1} parent=55 // pred_check
          %p961 = pneg %p126
        $region58: #{tpu_custom_call.1} parent=55 // pred_check_branch
          %963 = sbr.rel (%p961) target = $region60
        $region59: #{tpu_custom_call.1} parent=55 // pred_region
          %s964 = sand.u32 %s111, 1
          %s965 = scalar_lea.sflag [#allocation6], %s964
          %s966 = sand.u32 %s111, 1
          %s967 = smul.addr %s966, 2
          %s968 = scalar_lea.vmem [#allocation7], %s967
          %969 = dma.done %s965, 32
        $region60: #{tpu_custom_call.1} parent=55 // pred_fallthru
          _
      $region56: #{tpu_custom_call.1} parent=5 // pred_fallthru
        _
    $region6: #{tpu_custom_call.1} parent=1 // loop_footer
      %s19 = sadd.s32 1, %s15
    $region7: #{tpu_custom_call.1} parent=1 // loop_footer_branch
      %14 = sbr.rel target = $region3
    $region8: #{tpu_custom_call.1} parent=1 // loop_exit
      _
    %970 = vsyncpa [#allocation5], 1
    %s971 = scalar_lea.sflag [#allocation5], 1
    %972 = vsyncpa %s971, 1
    %973 = vsyncpa [#allocation6], 1
    %s974 = scalar_lea.sflag [#allocation6], 1
    %975 = vsyncpa %s974, 1

</llo_original>
